<compile_context>
chip_gen: v6e
topology: v6e:2x2x1
jax: 0.10.0
libtpu: 0.0.40
codegen_flags: <defaults>
</compile_context>

<pallas_src>
import functools

import jax
import jax.numpy as jnp
from jax.experimental import pallas as pl
from jax.experimental.pallas import tpu as pltpu

GAMMA = 4.0          # module default; implemented as ((1 - p)^2)^2
ALPHA = 1.0          # scalar alpha (module default)
EPSILON = 1e-9
# TODO(synk): list-valued (per-class) alpha is not implemented; scalar alpha only.


def _round_up(x, m):
    return (x + m - 1) // m * m


def _tpu_vmem_capacity_bytes():
    """Best-effort per-core VMEM capacity; conservative (v7x-sized) fallback."""
    try:
        info = pltpu.get_tpu_info()
        for name in ("vmem_capacity_bytes", "vmem_bytes"):
            v = getattr(info, name, None)
            if v:
                return int(v)
    except Exception:
        pass
    return 64 * 1024 * 1024


# ---------------------------------------------------------------------------
# Layout 1: batch on lanes (logits fed as [C, B]); used when C < 128.
# ---------------------------------------------------------------------------
def _kernel_batch_on_lanes(x_ref, t_ref, out_ref, acc_ref, *, batch, block_b, steps):
    g = pl.program_id(0)
    i = pl.program_id(1)

    @pl.when(i == 0)
    def _():
        acc_ref[...] = jnp.zeros_like(acc_ref)

    x = x_ref[...].astype(jnp.float32)        # (C, TB)  classes x batch-lane tile
    t = t_ref[...]                            # (1, TB)  int32 targets
    num_cls = x.shape[0]

    # Softmax denominator: the only full-tile transcendental work.
    m = jnp.max(x, axis=0, keepdims=True)     # (1, TB)
    e = jnp.exp(x - m)                        # (C, TB)
    s = jnp.sum(e, axis=0, keepdims=True)     # (1, TB)

    # Gather exp(x_t - m) of the target class; everything below is per-sample
    # and lane-dense ((1, TB) vectors).
    cls = jax.lax.broadcasted_iota(jnp.int32, x.shape, 0)
    e_t = jnp.sum(jnp.where(cls == t, e, 0.0), axis=0, keepdims=True)

    p_t = e_t / s
    q = 1.0 - p_t
    q2 = q * q
    q4 = q2 * q2                              # (1 - p_t)^gamma, gamma = 4
    logp = jnp.log(p_t + EPSILON)             # eps placement matches reference

    # Mask: in-range batch lane (tail block is a partial DMA, no host pad),
    # class-0 column zeroed like the reference, out-of-range targets -> 0.
    col = ((g * steps + i) * block_b
           + jax.lax.broadcasted_iota(jnp.int32, (1, block_b), 1))
    valid = (col < batch) & (t > 0) & (t < num_cls)
    loss = jnp.where(valid, (-ALPHA) * q4 * logp, 0.0)   # (1, TB)

    acc_ref[...] = acc_ref[...] + loss        # defer cross-lane reduce to the end

    @pl.when(i == steps - 1)
    def _():
        out_ref[...] = jnp.sum(acc_ref[...], keepdims=True)


def _call_batch_on_lanes(logits, target, num_chunks, vmem_cap):
    B, C = logits.shape
    itemsize = jnp.dtype(logits.dtype).itemsize
    big_vmem = vmem_cap >= 96 * 1024 * 1024   # v5e/v6e (128 MiB) vs v7x (64 MiB)

    # Lane-tile sizing: as big as the (generation-gated) double-buffer budget
    # allows, capped, and no bigger than one chunk's share of the batch.
    budget = (24 if big_vmem else 10) * 1024 * 1024      # logits double-buffer
    cap = 65536 if big_vmem else 32768
    block_b = min(cap, (budget // (2 * C * itemsize)) // 128 * 128)
    block_b = min(block_b, _round_up(pl.cdiv(B, max(1, num_chunks)), 128))
    block_b = max(128, block_b)

    nblocks = pl.cdiv(B, block_b)
    G = max(1, min(num_chunks, nblocks))
    steps = pl.cdiv(nblocks, G)
    last = nblocks - 1            # clamp so no DMA ever starts out of bounds

    # Lane-dense [C, B] layout: one XLA transpose pass buys a ~25x reduction in
    # VPU/EUP work versus lane-sparse [B, C] tiles when C << 128.
    xT = logits.T                  # (C, B)
    t2 = target.reshape(1, B)      # free reshape

    cost = pl.CostEstimate(
        flops=int(10 * B * C),
        transcendentals=int(B * C + 2 * B),
        bytes_accessed=int(B * C * itemsize + B * 4 + G * 4))

    kernel = functools.partial(_kernel_batch_on_lanes,
                               batch=B, block_b=block_b, steps=steps)
    out = pl.pallas_call(
        kernel,
        out_shape=jax.ShapeDtypeStruct((G, 1), jnp.float32),
        grid_spec=pltpu.PrefetchScalarGridSpec(
            num_scalar_prefetch=0,
            grid=(G, steps),
            in_specs=[
                pl.BlockSpec((C, block_b),
                             lambda g, i: (0, jnp.minimum(g * steps + i, last))),
                pl.BlockSpec((1, block_b),
                             lambda g, i: (0, jnp.minimum(g * steps + i, last))),
            ],
            out_specs=pl.BlockSpec((1, 1), lambda g, i: (g, 0)),
            scratch_shapes=[pltpu.VMEM((1, block_b), jnp.float32)],
        ),
        compiler_params=pltpu.CompilerParams(
            dimension_semantics=("parallel", "arbitrary"),
            vmem_limit_bytes=(64 if big_vmem else 32) * 1024 * 1024),
        cost_estimate=cost,
    )(xT, t2)
    return jnp.sum(out) * (1.0 / B)


# ---------------------------------------------------------------------------
# Layout 2: classes on lanes (natural [B, C]); used when C >= 128.
# ---------------------------------------------------------------------------
def _kernel_classes_on_lanes(x_ref, t_ref, out_ref, acc_ref, *, batch, block_b, steps):
    g = pl.program_id(0)
    i = pl.program_id(1)

    @pl.when(i == 0)
    def _():
        acc_ref[...] = jnp.zeros_like(acc_ref)

    x = x_ref[...].astype(jnp.float32)        # (TB, C)
    t = t_ref[...]                            # (TB, 1) int32
    num_cls = x.shape[1]

    m = jnp.max(x, axis=-1, keepdims=True)
    e = jnp.exp(x - m)
    s = jnp.sum(e, axis=-1, keepdims=True)

    cls = jax.lax.broadcasted_iota(jnp.int32, x.shape, 1)
    e_t = jnp.sum(jnp.where(cls == t, e, 0.0), axis=-1, keepdims=True)

    p_t = e_t / s
    q = 1.0 - p_t
    q2 = q * q
    q4 = q2 * q2                              # (1 - p_t)^4
    logp = jnp.log(p_t + EPSILON)

    row = ((g * steps + i) * block_b
           + jax.lax.broadcasted_iota(jnp.int32, (block_b, 1), 0))
    valid = (row < batch) & (t > 0) & (t < num_cls)
    loss = jnp.where(valid, (-ALPHA) * q4 * logp, 0.0)    # (TB, 1)

    # Per-row tail kept on (TB,1) vectors for lowering safety; it is a small
    # fraction of the full-tile softmax work for C >= 128.
    acc_ref[...] = acc_ref[...] + loss

    @pl.when(i == steps - 1)
    def _():
        out_ref[...] = jnp.sum(acc_ref[...], keepdims=True)


def _call_classes_on_lanes(logits, target, num_chunks, vmem_cap):
    B, C = logits.shape
    itemsize = jnp.dtype(logits.dtype).itemsize
    big_vmem = vmem_cap >= 96 * 1024 * 1024

    # Row-tile sizing, generation gated: ~40 MiB of double-buffered logits on
    # 128-MiB-VMEM chips (v5e/v6e), ~12 MiB on v7x (64 MiB per core).
    budget = (40 if big_vmem else 12) * 1024 * 1024
    cap = 8192 if big_vmem else 2048
    rows_budget = max(8, (budget // (2 * C * itemsize)) // 8 * 8)
    # TODO(synk): for pathologically large C (> ~200K f32 classes) even 8 rows
    # double-buffered exceed the v7x budget; such shapes are not supported.
    block_b = max(8, min(rows_budget, cap,
                         _round_up(pl.cdiv(B, max(1, num_chunks)), 8)))

    nblocks = pl.cdiv(B, block_b)
    G = max(1, min(num_chunks, nblocks))
    steps = pl.cdiv(nblocks, G)
    last = nblocks - 1

    t2 = target.reshape(B, 1)     # free reshape; no logits copy on this path

    cost = pl.CostEstimate(
        flops=int(10 * B * C),
        transcendentals=int(B * C + 2 * B),
        bytes_accessed=int(B * C * itemsize + B * 4 + G * 4))

    kernel = functools.partial(_kernel_classes_on_lanes,
                               batch=B, block_b=block_b, steps=steps)
    out = pl.pallas_call(
        kernel,
        out_shape=jax.ShapeDtypeStruct((G, 1), jnp.float32),
        grid_spec=pltpu.PrefetchScalarGridSpec(
            num_scalar_prefetch=0,
            grid=(G, steps),
            in_specs=[
                pl.BlockSpec((block_b, C),
                             lambda g, i: (jnp.minimum(g * steps + i, last), 0)),
                pl.BlockSpec((block_b, 1),
                             lambda g, i: (jnp.minimum(g * steps + i, last), 0)),
            ],
            out_specs=pl.BlockSpec((1, 1), lambda g, i: (g, 0)),
            scratch_shapes=[pltpu.VMEM((block_b, 1), jnp.float32)],
        ),
        compiler_params=pltpu.CompilerParams(
            dimension_semantics=("parallel", "arbitrary"),
            vmem_limit_bytes=(64 if big_vmem else 32) * 1024 * 1024),
        cost_estimate=cost,
    )(logits, t2)
    return jnp.sum(out) * (1.0 / B)


# ---------------------------------------------------------------------------
# Public entry point + pure-JAX reference
# ---------------------------------------------------------------------------
def focal_loss_pallas(logits, target, *, num_chunks=None):
    """logits: [B, C] float, target: [B] int. Returns scalar f32 mean focal loss."""
    B, C = logits.shape
    target = target.reshape(B).astype(jnp.int32)
    vmem_cap = _tpu_vmem_capacity_bytes()
    if num_chunks is None:
        # Two TensorCores (v7x-like, 64 MiB VMEM/core) -> split the parallel
        # axis; single-core chips (v5e/v6e) -> one chunk.
        num_chunks = 2 if vmem_cap <= 80 * 1024 * 1024 else 1
    if C < 128:
        return _call_batch_on_lanes(logits, target, num_chunks, vmem_cap)
    return _call_classes_on_lanes(logits, target, num_chunks, vmem_cap)


def focal_loss_ref(logits, target):
    """Pure-JAX reference mirroring the PyTorch module."""
    p = jax.nn.softmax(logits.astype(jnp.float32), axis=-1)
    one_hot = jax.nn.one_hot(target, logits.shape[-1], dtype=jnp.float32)
    one_hot = one_hot.at[:, 0].set(0.0)
    loss = -ALPHA * one_hot * jnp.power(1.0 - p, GAMMA) * jnp.log(p + EPSILON)
    return jnp.mean(jnp.sum(loss, axis=1))


if __name__ == "__main__":
    key = jax.random.PRNGKey(0)
    ks = jax.random.split(key, 8)

    def check(kx, kt, B, C):
        logits = jax.random.normal(kx, (B, C), dtype=jnp.float32)
        target = jax.random.randint(kt, (B,), 0, C, dtype=jnp.int32)
        out = jax.block_until_ready(focal_loss_pallas(logits, target))
        ref = focal_loss_ref(logits, target)
        assert jnp.allclose(out, ref, rtol=3e-5, atol=1e-5), (B, C, out, ref)

    # Small-C path (C=5, as in the module docstring): batch-on-lanes layout.
    check(ks[0], ks[1], 16, 5)
    # Tail masking on the batch-on-lanes path (B not a multiple of the tile).
    check(ks[2], ks[3], 300, 5)
    # Larger-C path: classes-on-lanes layout.
    check(ks[4], ks[5], 16, 256)
    # Tail masking on the classes-on-lanes path (B not a multiple of 8).
    check(ks[6], ks[7], 61, 256)

    print("KERNEL_OK")
</pallas_src>

<mosaic_0001>
module attributes {stable_mosaic.version = 11 : i64} {
  func.func @_kernel_batch_on_lanes(%arg0: i32, %arg1: i32, %arg2: memref<5x128xf32, #tpu.memory_space<vmem>>, %arg3: memref<1x128xi32, #tpu.memory_space<vmem>>, %arg4: memref<1x1xf32, #tpu.memory_space<vmem>>, %arg5: memref<1x128xf32, #tpu.memory_space<vmem>>) attributes {dimension_semantics = [#tpu.dimension_semantics<parallel>, #tpu.dimension_semantics<arbitrary>], iteration_bounds = array<i64: 1, 1>, scalar_prefetch = 0 : i64, scratch_operands = 1 : i64, tpu.core_type = #tpu.core_type<tc>, window_params = [{transform_indices = @transform_0, window_bounds = array<i64: 5, 128>}, {transform_indices = @transform_1, window_bounds = array<i64: 1, 128>}, {transform_indices = @transform_2, window_bounds = array<i64: 1, 1>}]} {
    %c0_i32 = arith.constant 0 : i32
    %0 = arith.cmpi eq, %arg1, %c0_i32 : i32
    %1 = arith.extui %0 : i1 to i32
    %c0_i32_0 = arith.constant 0 : i32
    %2 = arith.cmpi ne, %1, %c0_i32_0 : i32
    scf.if %2 {
      %cst_18 = arith.constant 0.000000e+00 : f32
      %52 = vector.broadcast %cst_18 : f32 to vector<1x128xf32>
      %c0_19 = arith.constant 0 : index
      %c0_20 = arith.constant 0 : index
      %53 = vector.load %arg5[%c0_19, %c0_20] : memref<1x128xf32, #tpu.memory_space<vmem>>, vector<1x128xf32>
      tpu.vector_store %arg5[%c0_19, %c0_20], %52 {strides = array<i32>} : memref<1x128xf32, #tpu.memory_space<vmem>>, vector<1x128xf32>,
    } else {
    }
    %c0 = arith.constant 0 : index
    %c0_1 = arith.constant 0 : index
    %3 = vector.load %arg2[%c0, %c0_1] : memref<5x128xf32, #tpu.memory_space<vmem>>, vector<5x128xf32>
    %c0_2 = arith.constant 0 : index
    %c0_3 = arith.constant 0 : index
    %4 = vector.load %arg3[%c0_2, %c0_3] : memref<1x128xi32, #tpu.memory_space<vmem>>, vector<1x128xi32>
    %cst = arith.constant dense<0xFF800000> : vector<128xf32>
    %5 = vector.multi_reduction <maximumf>, %3, %cst [0] : vector<5x128xf32> to vector<128xf32>
    %6 = vector.shape_cast %5 : vector<128xf32> to vector<1x128xf32>
    %7 = vector.broadcast %6 : vector<1x128xf32> to vector<5x128xf32>
    %8 = arith.subf %3, %7 : vector<5x128xf32>
    %9 = math.exp %8 : vector<5x128xf32>
    %cst_4 = arith.constant dense<0.000000e+00> : vector<128xf32>
    %10 = vector.multi_reduction <add>, %9, %cst_4 [0] : vector<5x128xf32> to vector<128xf32>
    %11 = vector.shape_cast %10 : vector<128xf32> to vector<1x128xf32>
    %12 = tpu.iota {dimensions = array<i32: 0>} : vector<5x128xi32>
    %13 = vector.broadcast %4 : vector<1x128xi32> to vector<5x128xi32>
    %14 = arith.cmpi eq, %12, %13 : vector<5x128xi32>
    %cst_5 = arith.constant 0.000000e+00 : f32
    %15 = vector.broadcast %cst_5 : f32 to vector<5x128xf32>
    %16 = arith.select %14, %9, %15 : vector<5x128xi1>, vector<5x128xf32>
    %cst_6 = arith.constant dense<0.000000e+00> : vector<128xf32>
    %17 = vector.multi_reduction <add>, %16, %cst_6 [0] : vector<5x128xf32> to vector<128xf32>
    %18 = vector.shape_cast %17 : vector<128xf32> to vector<1x128xf32>
    %19 = arith.divf %18, %11 : vector<1x128xf32>
    %cst_7 = arith.constant 1.000000e+00 : f32
    %20 = vector.broadcast %cst_7 : f32 to vector<1x128xf32>
    %21 = arith.subf %20, %19 : vector<1x128xf32>
    %22 = arith.mulf %21, %21 : vector<1x128xf32>
    %23 = arith.mulf %22, %22 : vector<1x128xf32>
    %cst_8 = arith.constant 9.99999971E-10 : f32
    %24 = vector.broadcast %cst_8 : f32 to vector<1x128xf32>
    %25 = arith.addf %19, %24 : vector<1x128xf32>
    %26 = math.log %25 : vector<1x128xf32>
    %c1_i32 = arith.constant 1 : i32
    %27 = arith.muli %arg0, %c1_i32 : i32
    %28 = arith.addi %27, %arg1 : i32
    %c128_i32 = arith.constant 128 : i32
    %29 = arith.muli %28, %c128_i32 : i32
    %30 = tpu.iota {dimensions = array<i32: 1>} : vector<1x128xi32>
    %31 = vector.broadcast %29 : i32 to vector<1x128xi32>
    %32 = arith.addi %31, %30 : vector<1x128xi32>
    %c16_i32 = arith.constant 16 : i32
    %33 = vector.broadcast %c16_i32 : i32 to vector<1x128xi32>
    %34 = arith.cmpi slt, %32, %33 : vector<1x128xi32>
    %c0_i32_9 = arith.constant 0 : i32
    %35 = vector.broadcast %c0_i32_9 : i32 to vector<1x128xi32>
    %36 = arith.cmpi sgt, %4, %35 : vector<1x128xi32>
    %37 = arith.andi %34, %36 : vector<1x128xi1>
    %c5_i32 = arith.constant 5 : i32
    %38 = vector.broadcast %c5_i32 : i32 to vector<1x128xi32>
    %39 = arith.cmpi slt, %4, %38 : vector<1x128xi32>
    %40 = arith.andi %37, %39 : vector<1x128xi1>
    %cst_10 = arith.constant -1.000000e+00 : f32
    %41 = vector.broadcast %cst_10 : f32 to vector<1x128xf32>
    %42 = arith.mulf %41, %23 : vector<1x128xf32>
    %43 = arith.mulf %42, %26 : vector<1x128xf32>
    %cst_11 = arith.constant 0.000000e+00 : f32
    %44 = vector.broadcast %cst_11 : f32 to vector<1x128xf32>
    %45 = arith.select %40, %43, %44 : vector<1x128xi1>, vector<1x128xf32>
    %c0_12 = arith.constant 0 : index
    %c0_13 = arith.constant 0 : index
    %46 = vector.load %arg5[%c0_12, %c0_13] : memref<1x128xf32, #tpu.memory_space<vmem>>, vector<1x128xf32>
    %47 = arith.addf %46, %45 : vector<1x128xf32>
    %c0_14 = arith.constant 0 : index
    %c0_15 = arith.constant 0 : index
    %48 = vector.load %arg5[%c0_14, %c0_15] : memref<1x128xf32, #tpu.memory_space<vmem>>, vector<1x128xf32>
    tpu.vector_store %arg5[%c0_14, %c0_15], %47 {strides = array<i32>} : memref<1x128xf32, #tpu.memory_space<vmem>>, vector<1x128xf32>,
    %c0_i32_16 = arith.constant 0 : i32
    %49 = arith.cmpi eq, %arg1, %c0_i32_16 : i32
    %50 = arith.extui %49 : i1 to i32
    %c0_i32_17 = arith.constant 0 : i32
    %51 = arith.cmpi ne, %50, %c0_i32_17 : i32
    scf.if %51 {
      %c0_18 = arith.constant 0 : index
      %c0_19 = arith.constant 0 : index
      %52 = vector.load %arg5[%c0_18, %c0_19] : memref<1x128xf32, #tpu.memory_space<vmem>>, vector<1x128xf32>
      %53 = vector.shape_cast %52 : vector<1x128xf32> to vector<1x1x128xf32>
      %cst_20 = arith.constant dense<0.000000e+00> : vector<1xf32>
      %54 = vector.multi_reduction <add>, %53, %cst_20 [1, 2] : vector<1x1x128xf32> to vector<1xf32>
      %55 = vector.shape_cast %54 : vector<1xf32> to vector<1x1x1xf32>
      %56 = vector.extract %55[0, 0, 0] : f32 from vector<1x1x1xf32>
      %57 = vector.broadcast %56 : f32 to vector<1x1xf32>
      %c0_21 = arith.constant 0 : index
      %c0_22 = arith.constant 0 : index
      %58 = vector.load %arg4[%c0_21, %c0_22] : memref<1x1xf32, #tpu.memory_space<vmem>>, vector<1x1xf32>
      tpu.vector_store %arg4[%c0_21, %c0_22], %57 {strides = array<i32>} : memref<1x1xf32, #tpu.memory_space<vmem>>, vector<1x1xf32>,
    } else {
    }
    return
  }
  func.func @transform_0(%arg0: i32, %arg1: i32) -> (i32, i32) {
    %c1_i32 = arith.constant 1 : i32
    %0 = arith.muli %arg0, %c1_i32 : i32
    %1 = arith.addi %0, %arg1 : i32
    %c0_i32 = arith.constant 0 : i32
    %2 = arith.minsi %1, %c0_i32 : i32
    %c0_i32_0 = arith.constant 0 : i32
    %c0_i32_1 = arith.constant 0 : i32
    return %c0_i32_0, %2 : i32, i32
  }
  func.func @transform_1(%arg0: i32, %arg1: i32) -> (i32, i32) {
    %c1_i32 = arith.constant 1 : i32
    %0 = arith.muli %arg0, %c1_i32 : i32
    %1 = arith.addi %0, %arg1 : i32
    %c0_i32 = arith.constant 0 : i32
    %2 = arith.minsi %1, %c0_i32 : i32
    %c0_i32_0 = arith.constant 0 : i32
    %c0_i32_1 = arith.constant 0 : i32
    return %c0_i32_0, %2 : i32, i32
  }
  func.func @transform_2(%arg0: i32, %arg1: i32) -> (i32, i32) {
    %c0_i32 = arith.constant 0 : i32
    %c0_i32_0 = arith.constant 0 : i32
    return %arg0, %c0_i32 : i32, i32
  }
}

</mosaic_0001>

<llo_original>
// kernel: tpu_custom_call.1
$region0: #{tpu_custom_call.1}
  #allocation0 [shape = 'u32[]', space=smem, size = 0x4, offset = 0x4, fixed_abs, tag = 'smem constant byte address 0x4 - core index']
  #allocation1 [shape = 'u32[144,128]{1,0:T(1,128)}', space=vmem, size = 0x12000, scoped, tag = 'internal scratch']
  #allocation2 [shape = 'f32[1,128]{1,0:T(1,128)}', space=vmem, size = 0x200, scoped, tag = 'scratch operand']
  %s0 = inlined_call_operand.hbm [shape: f32[5,16], index: 0, kind: input, shape index: {}]
  %s1 = inlined_call_operand.vmem [shape: s32[1,16], index: 1, kind: input, shape index: {}]
  %s2 = inlined_call_operand.hbm [shape: f32[1,1], index: 2, kind: output, shape index: {}]
  %s3 = sld [smem:[#allocation0]]
  $region30: #{tpu_custom_call.1} parent=0
    _
  %s5 = ssub.s32 1, %s3
  %s6 = scalar_select 0, %s5, %s3
  $region1: #{tpu_custom_call.1} parent=0
    #allocation3 [shape = 'u8[4096]{0}', space=vmem, size = 0x1000, scoped, tag = 'input window, operand 0, single buffered']
    #allocation4 [shape = 's32[1]{0}', space=sflag, size = 0x4, scoped, tag = 'scoped memory for tpu_custom_call.1']
    #allocation5 [shape = 's32[1]{0}', space=sflag, size = 0x4, scoped, tag = 'scoped memory for tpu_custom_call.1']
    #allocation6 [shape = 'u8[512]{0}', space=vmem, size = 0x400, scoped, tag = 'output window, operand 0, single buffered']
    %7 = vsyncpa [#allocation4], 0
    %8 = vsyncpa [#allocation5], 0
    // Predicated region
    $region2: #{tpu_custom_call.1} parent=1 // pred_check
      _
    $region3: #{tpu_custom_call.1} parent=1 // pred_check_branch
      %10 = sbr.rel (0) target = $region5
    $region4: #{tpu_custom_call.1} parent=1 // pred_region
      %s11 = sadd.s32 0, 0
      %p12 = scmp.lt.s32.totalorder %s11, 0
      %s13 = scalar_select %p12, %s11, 0
      %s15 = ssub.s32 128, 128
      %16 = vsyncadd [#allocation4], %s15
      %s17 = smul.addr %s13, 128
      %s18 = scalar_lea.hbm %s0, %s17
      %s20 = sshll.u32 [#allocation3], 4
      %s21 = int_to_ptr.vmem [resolvable:$true] %s20
      %23 = dma.hbm_to_vmem [thread:$0]  %s18, 128, %s21, [#allocation4]
    $region5: #{tpu_custom_call.1} parent=1 // pred_fallthru
      _
    // Predicated region
    $region6: #{tpu_custom_call.1} parent=1 // pred_check
      _
    $region7: #{tpu_custom_call.1} parent=1 // pred_check_branch
      %25 = sbr.rel (0) target = $region9
    $region8: #{tpu_custom_call.1} parent=1 // pred_region
      %s26 = sadd.s32 0, 0
      %p27 = scmp.lt.s32.totalorder %s26, 0
      %s28 = scalar_select %p27, %s26, 0
      %p29 = scmp.lt.s32.totalorder %s28, 0
      %s30 = scalar_select %p29, %s28, 0
      %s31 = scalar_lea.vmem %s1, %s30
      %s32 = sadd.s32 0, 0
      %p33 = scmp.lt.s32.totalorder %s32, 0
      %s34 = scalar_select %p33, %s32, 0
    $region9: #{tpu_custom_call.1} parent=1 // pred_fallthru
      _
    // Predicated region
    $region10: #{tpu_custom_call.1} parent=1 // pred_check
      _
    $region11: #{tpu_custom_call.1} parent=1 // pred_check_branch
      %36 = sbr.rel (0) target = $region13
    $region12: #{tpu_custom_call.1} parent=1 // pred_region
      %37 = dma.done [#allocation4], 128
    $region13: #{tpu_custom_call.1} parent=1 // pred_fallthru
      _
    %s38 = sadd.s32 0, 0
    %p39 = scmp.lt.s32.totalorder %s38, 0
    %s40 = scalar_select %p39, %s38, 0
    %p41 = scmp.lt.s32.totalorder %s40, 0
    %s42 = scalar_select %p41, %s40, 0
    %s43 = scalar_lea.vmem %s1, %s42
    %s44 = sadd.s32 0, 0
    %p45 = scmp.lt.s32.totalorder %s44, 0
    %s46 = scalar_select %p45, %s44, 0
    %s47 = sadd.s32 0, 0
    %p48 = scmp.lt.s32.totalorder %s47, 0
    %s49 = scalar_select %p48, %s47, 0
    %p50 = scmp.lt.s32.totalorder %s49, 0
    %s51 = scalar_select %p50, %s49, 0
    %s52 = scalar_lea.vmem %s1, %s51
    %s53 = sadd.s32 0, 0
    %p54 = scmp.lt.s32.totalorder %s53, 0
    %s55 = scalar_select %p54, %s53, 0
    %p56 = scmp.eq.s32.totalorder 0, 0
    // Predicated region
    $region14: #{tpu_custom_call.1} parent=1 // pred_check
      %p57 = pneg %p56
    $region15: #{tpu_custom_call.1} parent=1 // pred_check_branch
      %59 = sbr.rel (%p57) target = $region17
    $region16: #{tpu_custom_call.1} parent=1 // pred_region
      %60 = vst [vmem:[#allocation2] sm:$0x1] 0.0
    $region17: #{tpu_custom_call.1} parent=1 // pred_fallthru
      _
    %v61 = vld [vmem:[#allocation3] sm:$0x1f]
    %v62 = vld [vmem:[%s52] sm:$0x1]
    %vm63 = vcmask 1044480
    %v64 = vsel %vm63, %v61, -inf
    %v65 = vrot.slane %v64, 4
    %v66 = vmax.f32 %v64, %v65
    %v67 = vrot.slane %v66, 2
    %v68 = vmax.f32 %v66, %v67
    %v69 = vrot.slane %v68, 1
    %v70 = vmax.f32 %v68, %v69
    %v71 = vsub.f32 %v61, %v70
    %v72 = vmul.f32 %v71, 1.442695
    %v73 = vpow.pop %v72
    %v74 = vsel %vm63, %v73, 0.0
    %v75 = vrot.slane %v74, 4
    %v76 = vadd.f32 %v74, %v75
    %v77 = vrot.slane %v76, 2
    %v78 = vadd.f32 %v76, %v77
    %v79 = vrot.slane %v78, 1
    %v80 = vadd.f32 %v78, %v79
    %v81 = vlaneseq
    %v82 = vshrl.u32 %v81, 7
    %v83 = vlaneseq
    %v84 = vshrl.u32 %v83, 7
    %v85 = vsub.s32 0, %v84
    %v86 = vrot.slane %v62, %v85
    %vm87 = vcmp.eq.s32.totalorder %v82, %v86
    %v88 = vsel %vm87, %v73, 0.0
    %v89 = vsel %vm63, %v88, 0.0
    %v90 = vrot.slane %v89, 4
    %v91 = vadd.f32 %v89, %v90
    %v92 = vrot.slane %v91, 2
    %v93 = vadd.f32 %v91, %v92
    %v94 = vrot.slane %v93, 1
    %v95 = vadd.f32 %v93, %v94
    %v96 = vrcp.pop %v80
    %v97 = vmul.f32 %v95, %v96
    %v98 = vsub.f32 1.0, %v97
    %v99 = vmul.f32 %v98, %v98
    %v100 = vmul.f32 %v99, %v99
    %v101 = vadd.f32 %v97, 1e-09
    %v102 = vlog2.pop %v101
    %v103 = vmul.f32 %v102, 0.6931472
    %s104 = sadd.s32 0, 0
    %s105 = smul.u32 %s104, 128
    %v106 = vlaneseq
    %v107 = vand.u32 %v106, 127
    %v108 = vstv %s105
    %v109 = vadd.s32 %v108, %v107
    %vm110 = vcmp.lt.s32.totalorder %v109, 16
    %vm111 = vcmp.gt.s32.totalorder %v62, 0
    %vm112 = vmand %vm110, %vm111
    %vm113 = vcmp.lt.s32.totalorder %v62, 5
    %vm114 = vmand %vm112, %vm113
    %v115 = vmul.f32 %v100, -1.0
    %v116 = vmul.f32 %v115, %v103
    %v117 = vsel %vm114, %v116, 0.0
    %v118 = vld [vmem:[#allocation2] sm:$0x1]
    %v119 = vadd.f32 %v118, %v117
    %120 = vst [vmem:[#allocation2] sm:$0x1] %v119
    // Predicated region
    $region18: #{tpu_custom_call.1} parent=1 // pred_check
      %p121 = pneg %p56
    $region19: #{tpu_custom_call.1} parent=1 // pred_check_branch
      %123 = sbr.rel (%p121) target = $region21
    $region20: #{tpu_custom_call.1} parent=1 // pred_region
      %v124 = vld [vmem:[#allocation2] sm:$0x1]
      %vm125 = vcmask 1040384
      %v126 = vsel %vm125, %v124, 0.0
      %127 = vadd.xlane.f32.xlu0 %v126
      %v128 = vpop.xlane.xlu0 %127
      %v129 = vrot.slane %v128, 4
      %v130 = vadd.f32 %v128, %v129
      %v131 = vrot.slane %v130, 2
      %v132 = vadd.f32 %v130, %v131
      %v133 = vrot.slane %v132, 1
      %v134 = vadd.f32 %v132, %v133
      %s135 = vtos %v134
      %v136 = vstv %s135
      %vm137 = vcmask 0
      %138 = vst.msk [vmem:[#allocation6] sm:$0x1] %vm137, %v136
    $region21: #{tpu_custom_call.1} parent=1 // pred_fallthru
      _
    // Predicated region
    $region22: #{tpu_custom_call.1} parent=1 // pred_check
      _
    $region23: #{tpu_custom_call.1} parent=1 // pred_check_branch
      %140 = sbr.rel (0) target = $region25
    $region24: #{tpu_custom_call.1} parent=1 // pred_region
      %s142 = ssub.s32 16, 16
      %143 = vsyncadd [#allocation5], %s142
      %s145 = sshll.u32 [#allocation6], 4
      %s146 = int_to_ptr.vmem [resolvable:$true] %s145
      %148 = dma.vmem_to_hbm [thread:$0]  %s146, 16, %s2, [#allocation5]
    $region25: #{tpu_custom_call.1} parent=1 // pred_fallthru
      _
    // Predicated region
    $region26: #{tpu_custom_call.1} parent=1 // pred_check
      _
    $region27: #{tpu_custom_call.1} parent=1 // pred_check_branch
      %150 = sbr.rel (0) target = $region29
    $region28: #{tpu_custom_call.1} parent=1 // pred_region
      %151 = dma.done [#allocation5], 16
    $region29: #{tpu_custom_call.1} parent=1 // pred_fallthru
      _
    %152 = vsyncpa [#allocation4], 1
    %153 = vsyncpa [#allocation5], 1

</llo_original>
